<compile_context>
chip_gen: v6e
topology: v6e:2x2x1
jax: 0.10.0
libtpu: 0.0.40
codegen_flags: <defaults>
</compile_context>

<pallas_src>
import jax
import jax.numpy as jnp
from jax.experimental import pallas as pl
from jax.experimental.pallas import tpu as pltpu

# --- token constants (as in the rnnt repo) ---
NUL = 0   # blank
PAD = 0   # embedding padding index
BOS = 1   # beginning-of-sequence token


def _round_up(x, m):
    return (x + m - 1) // m * m


def _pick_tile(n, max_tile, quantum=8):
    """Largest multiple of `quantum` <= max_tile that divides n (n % quantum == 0)."""
    max_tile = max(quantum, min(max_tile, n))
    start = max_tile - max_tile % quantum
    for d in range(start, quantum - 1, -quantum):
        if n % d == 0:
            return d
    return quantum


def _mosaic_params(semantics, block_bytes=None):
    """CompilerParams with a VMEM limit derived from actual block sizes."""
    limit = None
    if block_bytes is not None:
        limit = int(min(64 * 2 ** 20, max(32 * 2 ** 20, int(block_bytes * 1.5))))
    return pltpu.CompilerParams(dimension_semantics=semantics,
                                vmem_limit_bytes=limit)


# ============================================================================
# Pallas kernels
# ============================================================================

def _make_lstm_kernel(with_ln, with_residual):
    """LSTM layer kernel: fused input projection + recurrence (+ LN [+ residual]).

    grid=(T//TB,); per grid step:
      * one (TB*Bp, I) x (I, 4H) bf16 MXU matmul for the input projection
        (off the serial critical path, no gx HBM round trip),
      * serial fori_loop over TB timesteps doing h @ W_hh^T + elementwise,
      * per-timestep store applies residual-add + LayerNorm (f32 stats) so the
        LN never touches HBM separately.
    Cell/hidden state carried across grid steps in f32 VMEM scratch.
    """

    def kernel(*refs):
        if with_ln:
            (x_ref, wih_ref, b_ref, whh_ref, g_ref, bln_ref,
             y_ref, h_sc, c_sc, gx_sc) = refs
        else:
            x_ref, wih_ref, b_ref, whh_ref, y_ref, h_sc, c_sc, gx_sc = refs

        @pl.when(pl.program_id(0) == 0)
        def _():
            h_sc[...] = jnp.zeros_like(h_sc)
            c_sc[...] = jnp.zeros_like(c_sc)

        TB, Bp, I = x_ref.shape
        H = h_sc.shape[-1]

        wih = wih_ref[...].astype(jnp.bfloat16)        # (I, 4H)
        whh = whh_ref[...].astype(jnp.bfloat16)        # (H, 4H)
        bias = b_ref[...]                              # (1, 4H) f32

        # Hoisted input projection for the whole time block (bf16 MXU, f32 acc).
        x2d = x_ref[...].reshape(TB * Bp, I).astype(jnp.bfloat16)
        gx = jnp.dot(x2d, wih, preferred_element_type=jnp.float32) + bias
        gx_sc[...] = gx.reshape(TB, Bp, 4 * H)

        if with_ln:
            gamma = g_ref[...].astype(jnp.float32)     # (1, H)
            beta = bln_ref[...].astype(jnp.float32)    # (1, H)

        def step(s, carry):
            h, c = carry                               # f32 (Bp, H)
            gates = gx_sc[s] + jnp.dot(h.astype(jnp.bfloat16), whh,
                                       preferred_element_type=jnp.float32)
            # NOTE: gate slices are lane-aligned only when H % 128 == 0
            # (perf hazard, not a numeric issue, for other H).
            ig = jax.nn.sigmoid(gates[:, 0 * H:1 * H])
            fg = jax.nn.sigmoid(gates[:, 1 * H:2 * H])
            gg = jnp.tanh(gates[:, 2 * H:3 * H])
            og = jax.nn.sigmoid(gates[:, 3 * H:4 * H])
            c = fg * c + ig * gg
            h = og * jnp.tanh(c)

            out = h
            if with_residual:
                # residual is the layer input itself (I == H for these layers)
                out = out + x_ref[s].astype(jnp.float32)
            if with_ln:
                mu = jnp.mean(out, axis=-1, keepdims=True)
                var = jnp.mean((out - mu) ** 2, axis=-1, keepdims=True)
                out = (out - mu) * jax.lax.rsqrt(var + 1e-5) * gamma + beta
            y_ref[s] = out.astype(y_ref.dtype)
            return (h, c)

        h, c = jax.lax.fori_loop(0, TB, step, (h_sc[...], c_sc[...]),
                                 unroll=True)
        h_sc[...] = h
        c_sc[...] = c

    return kernel


def _ln_kernel(x_ref, g_ref, b_ref, o_ref):
    x = x_ref[...].astype(jnp.float32)
    mu = jnp.mean(x, axis=-1, keepdims=True)
    var = jnp.mean((x - mu) ** 2, axis=-1, keepdims=True)
    y = (x - mu) * jax.lax.rsqrt(var + 1e-5)
    o_ref[...] = (y * g_ref[...] + b_ref[...]).astype(o_ref.dtype)


def _linear_kernel(x_ref, w_ref, b_ref, o_ref):
    x = x_ref[...].astype(jnp.bfloat16)
    w = w_ref[...].astype(jnp.bfloat16)
    o_ref[...] = (jnp.dot(x, w, preferred_element_type=jnp.float32)
                  + b_ref[...]).astype(o_ref.dtype)


def _make_joint_kernel(t_chunk):
    """Joint combine for one (batch, T-tile, U-tile) block, chunked over tT.

    ze_ref: (1, tT, J) = enc @ w1_enc        (precomputed, tiled matmul)
    zd_ref: (1, tU, J) = dec @ w1_dec + b1   (b1 hoisted into the dec side)
    Per chunk: (t_chunk, tU, J) broadcast+tanh (fits vregs) followed by one
    (t_chunk*tU, J) x (J, Vp) bf16 MXU matmul with a lane-dense store.
    """

    def kernel(ze_ref, zd_ref, w2_ref, b2_ref, o_ref):
        zd = zd_ref[0].astype(jnp.float32)              # (tU, J)
        w2 = w2_ref[...].astype(jnp.bfloat16)           # (J, Vp)
        b2 = b2_ref[...]                                # (1, Vp) f32
        tT = ze_ref.shape[1]
        tU, J = zd.shape
        Vp = w2.shape[1]

        for c0 in range(0, tT, t_chunk):
            ze = ze_ref[0, c0:c0 + t_chunk, :].astype(jnp.float32)  # (tc, J)
            z = ze[:, None, :] + zd[None, :, :]                     # (tc, tU, J)
            h = jnp.tanh(z).reshape(t_chunk * tU, J).astype(jnp.bfloat16)
            out = jnp.dot(h, w2, preferred_element_type=jnp.float32) + b2
            o_ref[0, c0:c0 + t_chunk] = out.reshape(
                t_chunk, tU, Vp).astype(o_ref.dtype)

    return kernel


# ============================================================================
# Pallas wrappers
# ============================================================================

def linear(x, w, b, *, row_tile=512, col_tile=1024):
    """x: (..., In) f32, w: (In, Out) (bf16 preferred), b: (Out,) f32.

    Row-tiled and column-tiled matmul + bias (bf16 operands, f32 accumulate).
    """
    shape = x.shape
    In = shape[-1]
    Out = w.shape[1]
    x2 = x.reshape(-1, In)
    N = x2.shape[0]
    Np = _round_up(N, 8)
    if Np != N:
        x2 = jnp.pad(x2, ((0, Np - N), (0, 0)))
    tr = _pick_tile(Np, row_tile, 8)

    # Column tiling: single full block if Out is small; otherwise the largest
    # multiple-of-128 divisor of Out that fits col_tile.
    if Out <= col_tile:
        tc = Out
    else:
        tc = Out
        m = col_tile - col_tile % 128
        while m >= 128:
            if Out % m == 0:
                tc = m
                break
            m -= 128
    n_cols = Out // tc

    w_kwargs = {"pipeline_mode": pl.Buffered(1)} if n_cols == 1 else {}
    b_kwargs = {"pipeline_mode": pl.Buffered(1)} if n_cols == 1 else {}

    block_bytes = (tr * In * 4 * 2
                   + In * tc * w.dtype.itemsize * (1 if n_cols == 1 else 2)
                   + tc * 4 * 2 + tr * tc * 4 * 2)

    out = pl.pallas_call(
        _linear_kernel,
        out_shape=jax.ShapeDtypeStruct((Np, Out), x.dtype),
        grid_spec=pltpu.PrefetchScalarGridSpec(
            num_scalar_prefetch=0,
            grid=(Np // tr, n_cols),
            in_specs=[
                pl.BlockSpec((tr, In), lambda i, j: (i, 0)),
                pl.BlockSpec((In, tc), lambda i, j: (0, j), **w_kwargs),
                pl.BlockSpec((1, tc), lambda i, j: (0, j), **b_kwargs),
            ],
            out_specs=pl.BlockSpec((tr, tc), lambda i, j: (i, j)),
        ),
        compiler_params=_mosaic_params(("parallel", "parallel"), block_bytes),
    )(x2, w, b.reshape(1, Out))
    if Np != N:
        out = out[:N]
    return out.reshape(shape[:-1] + (Out,))


def layer_norm(x, gamma, beta, *, row_tile=512):
    """LayerNorm over last dim; row-tiled, f32 statistics."""
    shape = x.shape
    D = shape[-1]
    x2 = x.reshape(-1, D)
    N = x2.shape[0]
    Np = _round_up(N, 8)
    if Np != N:
        x2 = jnp.pad(x2, ((0, Np - N), (0, 0)))
    tr = _pick_tile(Np, row_tile, 8)

    block_bytes = tr * D * 4 * 4 + D * 4 * 2

    out = pl.pallas_call(
        _ln_kernel,
        out_shape=jax.ShapeDtypeStruct((Np, D), x.dtype),
        grid_spec=pltpu.PrefetchScalarGridSpec(
            num_scalar_prefetch=0,
            grid=(Np // tr,),
            in_specs=[
                pl.BlockSpec((tr, D), lambda i: (i, 0)),
                pl.BlockSpec((1, D), lambda i: (0, 0),
                             pipeline_mode=pl.Buffered(1)),
                pl.BlockSpec((1, D), lambda i: (0, 0),
                             pipeline_mode=pl.Buffered(1)),
            ],
            out_specs=pl.BlockSpec((tr, D), lambda i: (i, 0)),
        ),
        compiler_params=_mosaic_params(("parallel",), block_bytes),
    )(x2, gamma.reshape(1, D), beta.reshape(1, D))
    if Np != N:
        out = out[:N]
    return out.reshape(shape)


def lstm_layer_tm(x_tbd, w_ih_t, w_hh_t, b, *, ln_g=None, ln_b=None,
                  with_residual=False, t_block=16):
    """One LSTM layer, time-major. x_tbd: (T, B, I) -> (T, B, H).

    Zero initial state.  Input projection, recurrence and (optionally)
    residual-add + LayerNorm all live in one kernel.  Batch should already be
    a multiple of 8 (padded once at model entry); time is padded to t_block.
    """
    T, B, I = x_tbd.shape
    H = w_hh_t.shape[0]
    with_ln = ln_g is not None
    if with_residual:
        assert I == H, "residual path requires layer input size == hidden size"

    t_block = min(t_block, max(8, _round_up(T, 8)))
    Bp = _round_up(B, 8)
    Tp = _round_up(T, t_block)
    x = x_tbd
    if Bp != B or Tp != T:
        x = jnp.pad(x, ((0, Tp - T), (0, Bp - B), (0, 0)))

    const = {"pipeline_mode": pl.Buffered(1)}   # grid-invariant weight blocks
    in_arrays = [x, w_ih_t, b.reshape(1, 4 * H), w_hh_t]
    in_specs = [
        pl.BlockSpec((t_block, Bp, I), lambda t: (t, 0, 0)),
        pl.BlockSpec((I, 4 * H), lambda t: (0, 0), **const),
        pl.BlockSpec((1, 4 * H), lambda t: (0, 0), **const),
        pl.BlockSpec((H, 4 * H), lambda t: (0, 0), **const),
    ]
    if with_ln:
        in_arrays += [ln_g.reshape(1, H), ln_b.reshape(1, H)]
        in_specs += [
            pl.BlockSpec((1, H), lambda t: (0, 0), **const),
            pl.BlockSpec((1, H), lambda t: (0, 0), **const),
        ]

    block_bytes = (t_block * Bp * I * 4 * 2                 # x blocks
                   + I * 4 * H * w_ih_t.dtype.itemsize       # w_ih (1 buf)
                   + H * 4 * H * w_hh_t.dtype.itemsize       # w_hh (1 buf)
                   + 4 * H * 4
                   + t_block * Bp * H * 4 * 2                # y blocks
                   + t_block * Bp * 4 * H * 4                # gx scratch
                   + 2 * Bp * H * 4)                         # h/c scratch

    y = pl.pallas_call(
        _make_lstm_kernel(with_ln, with_residual),
        out_shape=jax.ShapeDtypeStruct((Tp, Bp, H), x_tbd.dtype),
        grid_spec=pltpu.PrefetchScalarGridSpec(
            num_scalar_prefetch=0,
            grid=(Tp // t_block,),
            in_specs=in_specs,
            out_specs=pl.BlockSpec((t_block, Bp, H), lambda t: (t, 0, 0)),
            scratch_shapes=[pltpu.VMEM((Bp, H), jnp.float32),
                            pltpu.VMEM((Bp, H), jnp.float32),
                            pltpu.VMEM((t_block, Bp, 4 * H), jnp.float32)],
        ),
        compiler_params=_mosaic_params(("arbitrary",), block_bytes),
    )(*in_arrays)
    if Bp != B or Tp != T:
        y = y[:T, :B]
    return y


def joint_network(h_enc, h_dec, jp, *, t_tile=32, u_tile=16, t_chunk=8):
    """h_enc: (B, T, E), h_dec: (B, U, D). Returns (B, T, U, V) logits.

    Equivalent to Linear(concat(enc_t, dec_u)) -> tanh -> Linear: the first
    Linear is split per side (tiled matmuls, b1 folded into the decoder side);
    the combine kernel tiles T x U with tT chunking and a padded lane-dense V.
    """
    B, T, E = h_enc.shape
    _, U, D = h_dec.shape
    J = jp["w1_enc"].shape[1]
    Vp = jp["w2"].shape[1]
    V = jp["v_out"]

    ze = linear(h_enc, jp["w1_enc"], jnp.zeros((J,), jnp.float32))  # (B, T, J)
    zd = linear(h_dec, jp["w1_dec"], jp["b1"])                      # (B, U, J)

    Tp = _round_up(T, 8)
    Up = _round_up(U, 8)
    tT = _pick_tile(Tp, t_tile, 8)
    tU = _pick_tile(Up, u_tile, 8)
    if Tp != T:
        ze = jnp.pad(ze, ((0, 0), (0, Tp - T), (0, 0)))
    if Up != U:
        zd = jnp.pad(zd, ((0, 0), (0, Up - U), (0, 0)))
    t_chunk = min(t_chunk, tT)          # tT, t_chunk multiples of 8 -> divides

    block_bytes = (tT * J * 4 * 2 + tU * J * 4 * 2
                   + J * Vp * jp["w2"].dtype.itemsize + Vp * 4
                   + tT * tU * Vp * 4 * 2
                   + t_chunk * tU * J * 4 * 3)

    out = pl.pallas_call(
        _make_joint_kernel(t_chunk),
        out_shape=jax.ShapeDtypeStruct((B, Tp, Up, Vp), h_enc.dtype),
        grid_spec=pltpu.PrefetchScalarGridSpec(
            num_scalar_prefetch=0,
            grid=(B, Tp // tT, Up // tU),
            in_specs=[
                pl.BlockSpec((1, tT, J), lambda b, ti, ui: (b, ti, 0)),
                pl.BlockSpec((1, tU, J), lambda b, ti, ui: (b, ui, 0)),
                pl.BlockSpec((J, Vp), lambda b, ti, ui: (0, 0),
                             pipeline_mode=pl.Buffered(1)),
                pl.BlockSpec((1, Vp), lambda b, ti, ui: (0, 0),
                             pipeline_mode=pl.Buffered(1)),
            ],
            out_specs=pl.BlockSpec((1, tT, tU, Vp),
                                   lambda b, ti, ui: (b, ti, ui, 0)),
        ),
        compiler_params=_mosaic_params(("parallel",) * 3, block_bytes),
    )(ze, zd, jp["w2"], jp["b2"])
    if (Tp, Up, Vp) != (T, U, V):
        # TODO(synk): with production shapes (T, U multiples of the tile and V
        # a multiple of 128) this slice disappears entirely.
        out = out[:, :T, :U, :V]
    return out


# ============================================================================
# Model pieces (plain-JAX glue around the Pallas kernels)
# ============================================================================

def time_reduction_tm(x, factor=2):
    """Time-major (T, B, H) -> (ceil(T/f), B, H).

    Matches PyTorch TimeReduction exactly: zero-pad the tail and mean over the
    full factor (zeros included).
    """
    T, B, H = x.shape
    pad = (-T) % factor
    if pad:
        x = jnp.pad(x, ((0, pad), (0, 0), (0, 0)))
    return x.reshape(-1, factor, B, H).mean(axis=1)


def encoder_forward(p, xs, time_reductions=(1,), reduction_factor=2):
    # time-major end-to-end inside the encoder (no per-layer transposes)
    xs = jnp.transpose(xs, (1, 0, 2))                          # (T, B, I)
    xs = layer_norm(xs, p["norm_g"], p["norm_b"])              # nn.LayerNorm(input)
    # ResLayerNormLSTM: per-layer LN (+ residual for i>0) fused into the LSTM kernel
    for i, lp in enumerate(p["lstm_layers"]):
        xs = lstm_layer_tm(xs, lp["w_ih_t"], lp["w_hh_t"], lp["b"],
                           ln_g=lp["ln_g"], ln_b=lp["ln_b"],
                           with_residual=(i > 0))
        if i in time_reductions:
            xs = time_reduction_tm(xs, reduction_factor)
    xs = linear(xs, p["proj_w"], p["proj_b"])
    return jnp.transpose(xs, (1, 0, 2))                        # (B, T', E)


def decoder_forward(p, ys):
    B = ys.shape[0]
    # F.pad(ys, [1, 0], value=BOS)
    ys = jnp.concatenate(
        [jnp.full((B, 1), BOS, dtype=ys.dtype), ys], axis=1)
    # embedding gather (glue), directly time-major: (U+1, B, Evoc)
    xs = jnp.take(p["embed"], jnp.transpose(ys), axis=0)
    for lp in p["lstm_layers"]:
        xs = lstm_layer_tm(xs, lp["w_ih_t"], lp["w_hh_t"], lp["b"])
    xs = linear(xs, p["proj_w"], p["proj_b"])
    return jnp.transpose(xs, (1, 0, 2))                        # (B, U+1, D)


def transducer_forward(params, xs, ys, xlen, ylen):
    # NOTE: int(...) forces a device->host sync and each distinct (t_max,
    # u_max) recompiles the kernels; in production, bucket lengths to a small
    # static set.  Kept here to match the reference output shape exactly.
    t_max = int(jnp.max(xlen))
    u_max = int(jnp.max(ylen))
    xs = xs[:, :t_max]
    ys = ys[:, :u_max]

    # Pad batch once to the 8-sublane quantum (instead of per-kernel pads);
    # padded rows are dropped before the joint so no joint work is wasted.
    B = xs.shape[0]
    Bp = _round_up(B, 8)
    if Bp != B:
        xs = jnp.pad(xs, ((0, Bp - B), (0, 0), (0, 0)))
        ys = jnp.pad(ys, ((0, Bp - B), (0, 0)))                # PAD tokens

    # encoder and decoder recurrences are independent; XLA may overlap them
    # (on v7x the two stacks can land on different TensorCores).
    h_enc = encoder_forward(params["encoder"], xs)
    h_dec = decoder_forward(params["decoder"], ys)
    if Bp != B:
        h_enc = h_enc[:B]
        h_dec = h_dec[:B]

    logits = joint_network(h_enc, h_dec, params["joint"])
    # TODO(synk): RNNTLoss (output_loss=True path) not implemented; returning
    # the joint logits (output_loss=False semantics).
    return logits


# ============================================================================
# Parameter init (PyTorch layout) + one-time compute-layout preparation
# ============================================================================

def _init_lstm(key, in_size, hidden):
    k1, k2, k3 = jax.random.split(key, 3)
    return {
        "w_ih": 0.1 * jax.random.normal(k1, (4 * hidden, in_size), jnp.float32),
        "w_hh": 0.1 * jax.random.normal(k2, (4 * hidden, hidden), jnp.float32),
        # combined b_ih + b_hh
        "b": 0.1 * jax.random.normal(k3, (4 * hidden,), jnp.float32),
    }


def init_params(key, *, vocab_embed_size, vocab_size, input_size,
                enc_hidden_size, enc_layers, enc_proj_size,
                dec_hidden_size, dec_layers, dec_proj_size, joint_size):
    keys = jax.random.split(key, 32)
    ki = iter(keys)

    enc_lstms = []
    in_sz = input_size
    for _ in range(enc_layers):
        lp = _init_lstm(next(ki), in_sz, enc_hidden_size)
        lp["ln_g"] = jnp.ones((enc_hidden_size,), jnp.float32)
        lp["ln_b"] = jnp.zeros((enc_hidden_size,), jnp.float32)
        enc_lstms.append(lp)
        in_sz = enc_hidden_size
    encoder = {
        "norm_g": jnp.ones((input_size,), jnp.float32),
        "norm_b": jnp.zeros((input_size,), jnp.float32),
        "lstm_layers": enc_lstms,
        "proj_w": 0.1 * jax.random.normal(next(ki),
                                          (enc_hidden_size, enc_proj_size),
                                          jnp.float32),
        "proj_b": 0.1 * jax.random.normal(next(ki), (enc_proj_size,),
                                          jnp.float32),
    }

    embed = 0.1 * jax.random.normal(next(ki), (vocab_size, vocab_embed_size),
                                    jnp.float32)
    embed = embed.at[PAD].set(0.0)                             # padding_idx=PAD
    dec_lstms = []
    in_sz = vocab_embed_size
    for _ in range(dec_layers):
        dec_lstms.append(_init_lstm(next(ki), in_sz, dec_hidden_size))
        in_sz = dec_hidden_size
    decoder = {
        "embed": embed,
        "lstm_layers": dec_lstms,
        "proj_w": 0.1 * jax.random.normal(next(ki),
                                          (dec_hidden_size, dec_proj_size),
                                          jnp.float32),
        "proj_b": 0.1 * jax.random.normal(next(ki), (dec_proj_size,),
                                          jnp.float32),
    }

    joint = {
        "w1": 0.1 * jax.random.normal(next(ki),
                                      (enc_proj_size + dec_proj_size,
                                       joint_size), jnp.float32),
        "b1": 0.1 * jax.random.normal(next(ki), (joint_size,), jnp.float32),
        "w2": 0.1 * jax.random.normal(next(ki), (joint_size, vocab_size),
                                      jnp.float32),
        "b2": 0.1 * jax.random.normal(next(ki), (vocab_size,), jnp.float32),
    }
    return {"encoder": encoder, "decoder": decoder, "joint": joint}


def prepare_params(params, compute_dtype=jnp.bfloat16):
    """One-time layout prep (do this ONCE, not per forward):
    transpose LSTM weights to (in, 4H), cast all matmul weights to bf16,
    split the joint's first Linear per side and pad V to a multiple of 128."""
    enc, dec, joint = params["encoder"], params["decoder"], params["joint"]

    def prep_lstm(lp, with_ln):
        out = {
            "w_ih_t": jnp.transpose(lp["w_ih"]).astype(compute_dtype),
            "w_hh_t": jnp.transpose(lp["w_hh"]).astype(compute_dtype),
            "b": lp["b"].astype(jnp.float32),
        }
        if with_ln:
            out["ln_g"] = lp["ln_g"].astype(jnp.float32)
            out["ln_b"] = lp["ln_b"].astype(jnp.float32)
        return out

    enc_p = {
        "norm_g": enc["norm_g"], "norm_b": enc["norm_b"],
        "lstm_layers": [prep_lstm(lp, True) for lp in enc["lstm_layers"]],
        "proj_w": enc["proj_w"].astype(compute_dtype),
        "proj_b": enc["proj_b"].astype(jnp.float32),
    }
    dec_p = {
        "embed": dec["embed"],
        "lstm_layers": [prep_lstm(lp, False) for lp in dec["lstm_layers"]],
        "proj_w": dec["proj_w"].astype(compute_dtype),
        "proj_b": dec["proj_b"].astype(jnp.float32),
    }
    E = enc["proj_w"].shape[1]
    w1, w2 = joint["w1"], joint["w2"]
    V = w2.shape[1]
    Vp = _round_up(V, 128)
    w2p = jnp.pad(w2, ((0, 0), (0, Vp - V))) if Vp != V else w2
    b2p = jnp.pad(joint["b2"], (0, Vp - V)) if Vp != V else joint["b2"]
    joint_p = {
        "w1_enc": w1[:E].astype(compute_dtype),
        "w1_dec": w1[E:].astype(compute_dtype),
        "b1": joint["b1"].astype(jnp.float32),
        "w2": w2p.astype(compute_dtype),
        "b2": b2p.reshape(1, Vp).astype(jnp.float32),
        "v_out": V,
    }
    return {"encoder": enc_p, "decoder": dec_p, "joint": joint_p}


# ============================================================================
# Main
# ============================================================================

if __name__ == "__main__":
    # Small configuration
    VOCAB_EMBED = 16
    VOCAB = 16
    INPUT = 32
    ENC_HIDDEN = 32
    ENC_LAYERS = 2
    ENC_PROJ = 32
    DEC_HIDDEN = 32
    DEC_LAYERS = 2
    DEC_PROJ = 32
    JOINT = 32

    B, T_IN, U_IN = 2, 8, 5

    key = jax.random.PRNGKey(0)
    kp, kx, ky = jax.random.split(key, 3)
    raw_params = init_params(
        kp,
        vocab_embed_size=VOCAB_EMBED, vocab_size=VOCAB, input_size=INPUT,
        enc_hidden_size=ENC_HIDDEN, enc_layers=ENC_LAYERS,
        enc_proj_size=ENC_PROJ, dec_hidden_size=DEC_HIDDEN,
        dec_layers=DEC_LAYERS, dec_proj_size=DEC_PROJ, joint_size=JOINT)
    params = prepare_params(raw_params)        # one-time transpose + bf16 cast

    xs = jax.random.normal(kx, (B, T_IN, INPUT), jnp.float32)
    ys = jax.random.randint(ky, (B, U_IN), 2, VOCAB, dtype=jnp.int32)
    xlen = jnp.array([T_IN, T_IN - 2], dtype=jnp.int32)
    ylen = jnp.array([U_IN, U_IN - 1], dtype=jnp.int32)

    logits = transducer_forward(params, xs, ys, xlen, ylen)
    logits = jax.block_until_ready(logits)

    # Expected shape: (B, ceil(T/2) from time reduction, U+1 (BOS), vocab)
    expected = (B, T_IN // 2, U_IN + 1, VOCAB)
    assert logits.shape == expected, (logits.shape, expected)
    assert bool(jnp.all(jnp.isfinite(logits)))

    print("KERNEL_OK")
</pallas_src>

<mosaic_0001>
module attributes {stable_mosaic.version = 11 : i64} {
  func.func @_ln_kernel(%arg0: i32, %arg1: memref<64x32xf32, #tpu.memory_space<vmem>>, %arg2: memref<1x32xf32, #tpu.memory_space<vmem>>, %arg3: memref<1x32xf32, #tpu.memory_space<vmem>>, %arg4: memref<64x32xf32, #tpu.memory_space<vmem>>) attributes {dimension_semantics = [#tpu.dimension_semantics<parallel>], iteration_bounds = array<i64: 1>, scalar_prefetch = 0 : i64, scratch_operands = 0 : i64, tpu.core_type = #tpu.core_type<tc>, window_params = [{transform_indices = @transform_0, window_bounds = array<i64: 64, 32>}, {pipeline_mode = #tpu.pipeline_mode<synchronous>, transform_indices = @transform_1, window_bounds = array<i64: 1, 32>}, {pipeline_mode = #tpu.pipeline_mode<synchronous>, transform_indices = @transform_2, window_bounds = array<i64: 1, 32>}, {transform_indices = @transform_3, window_bounds = array<i64: 64, 32>}]} {
    %c0 = arith.constant 0 : index
    %c0_0 = arith.constant 0 : index
    %0 = vector.load %arg1[%c0, %c0_0] : memref<64x32xf32, #tpu.memory_space<vmem>>, vector<64x32xf32>
    %cst = arith.constant dense<0.000000e+00> : vector<64xf32>
    %1 = vector.multi_reduction <add>, %0, %cst [1] : vector<64x32xf32> to vector<64xf32>
    %2 = vector.shape_cast %1 : vector<64xf32> to vector<64x1xf32>
    %cst_1 = arith.constant 3.200000e+01 : f32
    %3 = vector.broadcast %cst_1 : f32 to vector<64x1xf32>
    %4 = arith.divf %2, %3 : vector<64x1xf32>
    %5 = vector.broadcast %4 : vector<64x1xf32> to vector<64x32xf32>
    %6 = arith.subf %0, %5 : vector<64x32xf32>
    %7 = arith.mulf %6, %6 : vector<64x32xf32>
    %cst_2 = arith.constant dense<0.000000e+00> : vector<64xf32>
    %8 = vector.multi_reduction <add>, %7, %cst_2 [1] : vector<64x32xf32> to vector<64xf32>
    %9 = vector.shape_cast %8 : vector<64xf32> to vector<64x1xf32>
    %cst_3 = arith.constant 3.200000e+01 : f32
    %10 = vector.broadcast %cst_3 : f32 to vector<64x1xf32>
    %11 = arith.divf %9, %10 : vector<64x1xf32>
    %12 = vector.broadcast %4 : vector<64x1xf32> to vector<64x32xf32>
    %13 = arith.subf %0, %12 : vector<64x32xf32>
    %cst_4 = arith.constant 9.99999974E-6 : f32
    %14 = vector.broadcast %cst_4 : f32 to vector<64x1xf32>
    %15 = arith.addf %11, %14 : vector<64x1xf32>
    %16 = math.rsqrt %15 : vector<64x1xf32>
    %17 = vector.broadcast %16 : vector<64x1xf32> to vector<64x32xf32>
    %18 = arith.mulf %13, %17 : vector<64x32xf32>
    %c0_5 = arith.constant 0 : index
    %c0_6 = arith.constant 0 : index
    %19 = vector.load %arg2[%c0_5, %c0_6] : memref<1x32xf32, #tpu.memory_space<vmem>>, vector<1x32xf32>
    %20 = vector.broadcast %19 : vector<1x32xf32> to vector<64x32xf32>
    %21 = arith.mulf %18, %20 : vector<64x32xf32>
    %c0_7 = arith.constant 0 : index
    %c0_8 = arith.constant 0 : index
    %22 = vector.load %arg3[%c0_7, %c0_8] : memref<1x32xf32, #tpu.memory_space<vmem>>, vector<1x32xf32>
    %23 = vector.broadcast %22 : vector<1x32xf32> to vector<64x32xf32>
    %24 = arith.addf %21, %23 : vector<64x32xf32>
    %c0_9 = arith.constant 0 : index
    %c0_10 = arith.constant 0 : index
    %25 = vector.load %arg4[%c0_9, %c0_10] : memref<64x32xf32, #tpu.memory_space<vmem>>, vector<64x32xf32>
    tpu.vector_store %arg4[%c0_9, %c0_10], %24 {strides = array<i32>} : memref<64x32xf32, #tpu.memory_space<vmem>>, vector<64x32xf32>,
    return
  }
  func.func @transform_0(%arg0: i32) -> (i32, i32) {
    %c0_i32 = arith.constant 0 : i32
    %c0_i32_0 = arith.constant 0 : i32
    return %arg0, %c0_i32 : i32, i32
  }
  func.func @transform_1(%arg0: i32) -> (i32, i32) {
    %c0_i32 = arith.constant 0 : i32
    %c0_i32_0 = arith.constant 0 : i32
    %c0_i32_1 = arith.constant 0 : i32
    return %c0_i32, %c0_i32_0 : i32, i32
  }
  func.func @transform_2(%arg0: i32) -> (i32, i32) {
    %c0_i32 = arith.constant 0 : i32
    %c0_i32_0 = arith.constant 0 : i32
    %c0_i32_1 = arith.constant 0 : i32
    return %c0_i32, %c0_i32_0 : i32, i32
  }
  func.func @transform_3(%arg0: i32) -> (i32, i32) {
    %c0_i32 = arith.constant 0 : i32
    %c0_i32_0 = arith.constant 0 : i32
    return %arg0, %c0_i32 : i32, i32
  }
}

</mosaic_0001>

<llo_original>
// kernel: tpu_custom_call.1
$region0: #{tpu_custom_call.1}
  #allocation0 [shape = 'u32[]', space=smem, size = 0x4, offset = 0x4, fixed_abs, tag = 'smem constant byte address 0x4 - core index']
  #allocation1 [shape = 'u32[144,128]{1,0:T(1,128)}', space=vmem, size = 0x12000, scoped, tag = 'internal scratch']
  %s0 = inlined_call_operand.vmem [shape: f32[64,32], index: 0, kind: input, shape index: {}]
  %s1 = inlined_call_operand.vmem [shape: f32[1,32], index: 1, kind: input, shape index: {}]
  %s2 = inlined_call_operand.vmem [shape: f32[1,32], index: 2, kind: input, shape index: {}]
  %s3 = inlined_call_operand.vmem [shape: f32[64,32], index: 3, kind: output, shape index: {}]
  %s4 = sld [smem:[#allocation0]]
  $region22: #{tpu_custom_call.1} parent=0
    _
  %s6 = ssub.s32 1, %s4
  %s7 = scalar_select 0, %s6, %s4
  // Predicated region
  $region2: #{tpu_custom_call.1} parent=0 // pred_check
    _
  $region3: #{tpu_custom_call.1} parent=0 // pred_check_branch
    %9 = sbr.rel (0) target = $region5
  $region4: #{tpu_custom_call.1} parent=0 // pred_region
    _
  $region5: #{tpu_custom_call.1} parent=0 // pred_fallthru
    _
  // Predicated region
  $region6: #{tpu_custom_call.1} parent=0 // pred_check
    _
  $region7: #{tpu_custom_call.1} parent=0 // pred_check_branch
    %11 = sbr.rel (0) target = $region9
  $region8: #{tpu_custom_call.1} parent=0 // pred_region
    _
  $region9: #{tpu_custom_call.1} parent=0 // pred_fallthru
    _
  // Predicated region
  $region10: #{tpu_custom_call.1} parent=0 // pred_check
    _
  $region11: #{tpu_custom_call.1} parent=0 // pred_check_branch
    %13 = sbr.rel (0) target = $region13
  $region12: #{tpu_custom_call.1} parent=0 // pred_region
    _
  $region13: #{tpu_custom_call.1} parent=0 // pred_fallthru
    _
  %v14 = vld [vmem:[%s0] sm:$0xff]
  %v15 = vld [vmem:[%s0 + $0x8] sm:$0xff]
  %v16 = vld [vmem:[%s0 + $0x10] sm:$0xff]
  %v17 = vld [vmem:[%s0 + $0x18] sm:$0xff]
  %v18 = vld [vmem:[%s0 + $0x20] sm:$0xff]
  %v19 = vld [vmem:[%s0 + $0x28] sm:$0xff]
  %v20 = vld [vmem:[%s0 + $0x30] sm:$0xff]
  %v21 = vld [vmem:[%s0 + $0x38] sm:$0xff]
  %vm22 = vcmask 261120
  %v23 = vsel %vm22, %v14, 0.0
  %24 = vadd.xlane.f32.xlu0 %v23
  %v25 = vpop.xlane.xlu0 %24
  %v26 = vsel %vm22, %v15, 0.0
  %27 = vadd.xlane.f32.xlu0 %v26
  %v28 = vpop.xlane.xlu0 %27
  %v29 = vsel %vm22, %v16, 0.0
  %30 = vadd.xlane.f32.xlu0 %v29
  %v31 = vpop.xlane.xlu0 %30
  %v32 = vsel %vm22, %v17, 0.0
  %33 = vadd.xlane.f32.xlu0 %v32
  %v34 = vpop.xlane.xlu0 %33
  %v35 = vsel %vm22, %v18, 0.0
  %36 = vadd.xlane.f32.xlu0 %v35
  %v37 = vpop.xlane.xlu0 %36
  %v38 = vsel %vm22, %v19, 0.0
  %39 = vadd.xlane.f32.xlu0 %v38
  %v40 = vpop.xlane.xlu0 %39
  %v41 = vsel %vm22, %v20, 0.0
  %42 = vadd.xlane.f32.xlu0 %v41
  %v43 = vpop.xlane.xlu0 %42
  %v44 = vsel %vm22, %v21, 0.0
  %45 = vadd.xlane.f32.xlu0 %v44
  %v46 = vpop.xlane.xlu0 %45
  %v47 = vrcp.pop 32.0
  %v48 = vmul.f32 %v25, %v47
  %v49 = vmul.f32 %v28, %v47
  %v50 = vmul.f32 %v31, %v47
  %v51 = vmul.f32 %v34, %v47
  %v52 = vmul.f32 %v37, %v47
  %v53 = vmul.f32 %v40, %v47
  %v54 = vmul.f32 %v43, %v47
  %v55 = vmul.f32 %v46, %v47
  %v56 = vsub.f32 %v14, %v48
  %v57 = vsub.f32 %v15, %v49
  %v58 = vsub.f32 %v16, %v50
  %v59 = vsub.f32 %v17, %v51
  %v60 = vsub.f32 %v18, %v52
  %v61 = vsub.f32 %v19, %v53
  %v62 = vsub.f32 %v20, %v54
  %v63 = vsub.f32 %v21, %v55
  %v64 = vmul.f32 %v56, %v56
  %v65 = vmul.f32 %v57, %v57
  %v66 = vmul.f32 %v58, %v58
  %v67 = vmul.f32 %v59, %v59
  %v68 = vmul.f32 %v60, %v60
  %v69 = vmul.f32 %v61, %v61
  %v70 = vmul.f32 %v62, %v62
  %v71 = vmul.f32 %v63, %v63
  %v72 = vsel %vm22, %v64, 0.0
  %73 = vadd.xlane.f32.xlu0 %v72
  %v74 = vpop.xlane.xlu0 %73
  %v75 = vsel %vm22, %v65, 0.0
  %76 = vadd.xlane.f32.xlu0 %v75
  %v77 = vpop.xlane.xlu0 %76
  %v78 = vsel %vm22, %v66, 0.0
  %79 = vadd.xlane.f32.xlu0 %v78
  %v80 = vpop.xlane.xlu0 %79
  %v81 = vsel %vm22, %v67, 0.0
  %82 = vadd.xlane.f32.xlu0 %v81
  %v83 = vpop.xlane.xlu0 %82
  %v84 = vsel %vm22, %v68, 0.0
  %85 = vadd.xlane.f32.xlu0 %v84
  %v86 = vpop.xlane.xlu0 %85
  %v87 = vsel %vm22, %v69, 0.0
  %88 = vadd.xlane.f32.xlu0 %v87
  %v89 = vpop.xlane.xlu0 %88
  %v90 = vsel %vm22, %v70, 0.0
  %91 = vadd.xlane.f32.xlu0 %v90
  %v92 = vpop.xlane.xlu0 %91
  %v93 = vsel %vm22, %v71, 0.0
  %94 = vadd.xlane.f32.xlu0 %v93
  %v95 = vpop.xlane.xlu0 %94
  %v96 = vmul.f32 %v74, %v47
  %v97 = vmul.f32 %v77, %v47
  %v98 = vmul.f32 %v80, %v47
  %v99 = vmul.f32 %v83, %v47
  %v100 = vmul.f32 %v86, %v47
  %v101 = vmul.f32 %v89, %v47
  %v102 = vmul.f32 %v92, %v47
  %v103 = vmul.f32 %v95, %v47
  %v104 = vadd.f32 %v96, 1e-05
  %v105 = vadd.f32 %v97, 1e-05
  %v106 = vadd.f32 %v98, 1e-05
  %v107 = vadd.f32 %v99, 1e-05
  %v108 = vadd.f32 %v100, 1e-05
  %v109 = vadd.f32 %v101, 1e-05
  %v110 = vadd.f32 %v102, 1e-05
  %v111 = vadd.f32 %v103, 1e-05
  %v112 = vrsqrt.pop %v104
  %v113 = vrsqrt.pop %v105
  %v114 = vrsqrt.pop %v106
  %v115 = vrsqrt.pop %v107
  %v116 = vrsqrt.pop %v108
  %v117 = vrsqrt.pop %v109
  %v118 = vrsqrt.pop %v110
  %v119 = vrsqrt.pop %v111
  %v120 = vmul.f32 %v56, %v112
  %v121 = vmul.f32 %v57, %v113
  %v122 = vmul.f32 %v58, %v114
  %v123 = vmul.f32 %v59, %v115
  %v124 = vmul.f32 %v60, %v116
  %v125 = vmul.f32 %v61, %v117
  %v126 = vmul.f32 %v62, %v118
  %v127 = vmul.f32 %v63, %v119
  %v128 = vld [vmem:[%s1] sm:$0x1]
  %v130 = vlaneseq
  %v131 = vshrl.u32 %v130, 7
  %v132 = vsub.s32 0, %v131
  %v133 = vrot.slane %v128, %v132
  %v135 = vmul.f32 %v120, %v133
  %v136 = vmul.f32 %v121, %v133
  %v137 = vmul.f32 %v122, %v133
  %v138 = vmul.f32 %v123, %v133
  %v139 = vmul.f32 %v124, %v133
  %v140 = vmul.f32 %v125, %v133
  %v141 = vmul.f32 %v126, %v133
  %v142 = vmul.f32 %v127, %v133
  %v143 = vld [vmem:[%s2] sm:$0x1]
  %v145 = vlaneseq
  %v146 = vshrl.u32 %v145, 7
  %v147 = vsub.s32 0, %v146
  %v148 = vrot.slane %v143, %v147
  %v150 = vadd.f32 %v135, %v148
  %v151 = vadd.f32 %v136, %v148
  %v152 = vadd.f32 %v137, %v148
  %v153 = vadd.f32 %v138, %v148
  %v154 = vadd.f32 %v139, %v148
  %v155 = vadd.f32 %v140, %v148
  %v156 = vadd.f32 %v141, %v148
  %v157 = vadd.f32 %v142, %v148
  %158 = vst.msk [vmem:[%s3] sm:$0xff] %vm22, %v150
  %159 = vst.msk [vmem:[%s3 + $0x8] sm:$0xff] %vm22, %v151
  %160 = vst.msk [vmem:[%s3 + $0x10] sm:$0xff] %vm22, %v152
  %161 = vst.msk [vmem:[%s3 + $0x18] sm:$0xff] %vm22, %v153
  %162 = vst.msk [vmem:[%s3 + $0x20] sm:$0xff] %vm22, %v154
  %163 = vst.msk [vmem:[%s3 + $0x28] sm:$0xff] %vm22, %v155
  %164 = vst.msk [vmem:[%s3 + $0x30] sm:$0xff] %vm22, %v156
  %165 = vst.msk [vmem:[%s3 + $0x38] sm:$0xff] %vm22, %v157
  // Predicated region
  $region14: #{tpu_custom_call.1} parent=0 // pred_check
    _
  $region15: #{tpu_custom_call.1} parent=0 // pred_check_branch
    %167 = sbr.rel (0) target = $region17
  $region16: #{tpu_custom_call.1} parent=0 // pred_region
    _
  $region17: #{tpu_custom_call.1} parent=0 // pred_fallthru
    _
  // Predicated region
  $region18: #{tpu_custom_call.1} parent=0 // pred_check
    _
  $region19: #{tpu_custom_call.1} parent=0 // pred_check_branch
    %169 = sbr.rel (0) target = $region21
  $region20: #{tpu_custom_call.1} parent=0 // pred_region
    _
  $region21: #{tpu_custom_call.1} parent=0 // pred_fallthru
    _

</llo_original>
